<compile_context>
chip_gen: v7x
topology: tpu7x:2x2x1
jax: 0.10.0
libtpu: 0.0.40
codegen_flags: <defaults>
</compile_context>

<pallas_src>
import jax
import jax.numpy as jnp
from jax import lax
from jax.experimental import pallas as pl
from jax.experimental.pallas import tpu as pltpu

block_size = 32
n_embed = 128

HPAD = 128                                  # head dim padded to full lane width
SCALE = float(n_embed) ** -0.5              # trace-time constant (module uses C**-0.5)


def _head_kernel(x_ref, w_ref, o_ref):
    # x_ref: (Bblk, T, C) bf16, w_ref: (C, 3*HPAD) bf16, o_ref: (Bblk, T, HPAD) f32
    Bblk, T, C = x_ref.shape
    x2d = x_ref[...].reshape(Bblk * T, C)                                  # (Bblk*T, C)

    # Fused K|Q|V projection: one bf16 MXU pass, f32 accumulation.
    proj = jnp.dot(x2d, w_ref[...], preferred_element_type=jnp.float32)    # (Bblk*T, 3*HPAD)

    k = proj[:, 0 * HPAD:1 * HPAD].reshape(Bblk, T, HPAD)
    q = proj[:, 1 * HPAD:2 * HPAD].reshape(Bblk, T, HPAD)
    v = proj[:, 2 * HPAD:3 * HPAD].reshape(Bblk, T, HPAD)

    # Scores: contract the (zero-padded) head axis directly — no explicit k.T.
    wei = jnp.einsum(
        'btd,bsd->bts',
        q.astype(jnp.bfloat16), k.astype(jnp.bfloat16),
        preferred_element_type=jnp.float32,
    ) * SCALE                                                              # (Bblk, T, T)

    # Causal (tril) mask: position t attends only to positions s <= t.
    row = lax.broadcasted_iota(jnp.int32, (T, T), 0)
    col = lax.broadcasted_iota(jnp.int32, (T, T), 1)
    wei = jnp.where((col <= row)[None, :, :], wei, -jnp.inf)

    # Numerically-stable softmax in f32; approx reciprocal runs on the idle EUP.
    wei = jnp.exp(wei - jnp.max(wei, axis=-1, keepdims=True))
    wei = wei * pl.reciprocal(jnp.sum(wei, axis=-1, keepdims=True), approx=True)

    out = jnp.einsum(
        'bts,bsd->btd',
        wei.astype(jnp.bfloat16), v.astype(jnp.bfloat16),
        preferred_element_type=jnp.float32,
    )                                                                      # (Bblk, T, HPAD)
    o_ref[...] = out.astype(o_ref.dtype)                                   # lane-dense store


def head_forward(x, w_key, w_query, w_value, *, batch_block=8):
    """x: (B, T, C) float32; weights: (C, H) float32. Returns (B, T, H) float32."""
    B, T, C = x.shape
    assert C == n_embed
    assert T <= block_size, "this demo assumes T <= block_size (tril crop)"
    H = w_key.shape[1]
    assert H <= HPAD

    Bblk = min(B, batch_block)
    assert B % Bblk == 0, "demo assumes batch divisible by the batch block"
    num_blocks = B // Bblk

    def pad_cols(w):                                   # (C, H) -> (C, HPAD)
        return jnp.pad(w, ((0, 0), (0, HPAD - H)))

    # Fused, zero-padded K|Q|V weight, bf16 for the MXU (halves weight DMA bytes).
    w_fused = jnp.concatenate(
        [pad_cols(w_key), pad_cols(w_query), pad_cols(w_value)], axis=1
    ).astype(jnp.bfloat16)                             # (C, 3*HPAD)
    x_bf = x.astype(jnp.bfloat16)

    cost = pl.CostEstimate(
        flops=2 * B * T * C * 3 * HPAD + 4 * B * T * T * HPAD,
        transcendentals=B * T * T + B * T,
        bytes_accessed=x_bf.size * 2 + w_fused.size * 2 + B * T * HPAD * 4,
    )

    out_padded = pl.pallas_call(
        _head_kernel,
        out_shape=jax.ShapeDtypeStruct((B, T, HPAD), jnp.float32),
        grid_spec=pl.GridSpec(
            grid=(num_blocks,),
            in_specs=[
                pl.BlockSpec((Bblk, T, C), lambda b: (b, 0, 0)),        # x block
                pl.BlockSpec((C, 3 * HPAD), lambda b: (0, 0)),          # fused weights
            ],
            out_specs=pl.BlockSpec((Bblk, T, HPAD), lambda b: (b, 0, 0)),
        ),
        compiler_params=pltpu.CompilerParams(
            dimension_semantics=("parallel",)),                          # megacore on v7x
        cost_estimate=cost,
    )(x_bf, w_fused)

    return out_padded[:, :, :H]


def _reference(x, w_key, w_query, w_value):
    """Pure-JAX reference of the PyTorch forward (eval mode), mirroring the
    kernel's precision choices (bf16 MXU operands, f32 accumulation/softmax)."""
    bq = lambda a: a.astype(jnp.bfloat16)
    T = x.shape[1]
    k = jnp.einsum('btc,ch->bth', bq(x), bq(w_key), preferred_element_type=jnp.float32)
    q = jnp.einsum('btc,ch->bth', bq(x), bq(w_query), preferred_element_type=jnp.float32)
    v = jnp.einsum('btc,ch->bth', bq(x), bq(w_value), preferred_element_type=jnp.float32)
    wei = jnp.einsum('bth,bsh->bts', bq(q), bq(k),
                     preferred_element_type=jnp.float32) * SCALE
    mask = jnp.tril(jnp.ones((T, T), dtype=bool))
    wei = jnp.where(mask[None, :, :], wei, -jnp.inf)
    wei = jax.nn.softmax(wei, axis=-1)
    return jnp.einsum('bts,bsh->bth', bq(wei), bq(v),
                      preferred_element_type=jnp.float32)


if __name__ == "__main__":
    B, T = 2, 8
    head_size = 16

    key = jax.random.PRNGKey(0)
    kx, kk, kq, kv = jax.random.split(key, 4)

    x = jax.random.normal(kx, (B, T, n_embed), dtype=jnp.float32)
    # deterministic "Linear(n_embed, head_size, bias=False)" weights, stored (C, H)
    w_key = jax.random.normal(kk, (n_embed, head_size), dtype=jnp.float32) * (n_embed ** -0.5)
    w_query = jax.random.normal(kq, (n_embed, head_size), dtype=jnp.float32) * (n_embed ** -0.5)
    w_value = jax.random.normal(kv, (n_embed, head_size), dtype=jnp.float32) * (n_embed ** -0.5)

    out = head_forward(x, w_key, w_query, w_value)
    jax.block_until_ready(out)

    ref = _reference(x, w_key, w_query, w_value)
    assert out.shape == (B, T, head_size)
    assert jnp.allclose(out, ref, atol=1e-2, rtol=1e-2), "mismatch vs reference"

    print("KERNEL_OK")
</pallas_src>

<mosaic_0001>
module attributes {stable_mosaic.version = 11 : i64} {
  func.func @_head_kernel(%arg0: i32, %arg1: memref<2x8x128xbf16, #tpu.memory_space<vmem>>, %arg2: memref<128x384xbf16, #tpu.memory_space<vmem>>, %arg3: memref<2x8x128xf32, #tpu.memory_space<vmem>>) attributes {dimension_semantics = [#tpu.dimension_semantics<parallel>], iteration_bounds = array<i64: 1>, scalar_prefetch = 0 : i64, scratch_operands = 0 : i64, tpu.core_type = #tpu.core_type<tc>, window_params = [{transform_indices = @transform_0, window_bounds = array<i64: 2, 8, 128>}, {pipeline_mode = #tpu.pipeline_mode<synchronous>, transform_indices = @transform_1, window_bounds = array<i64: 128, 384>}, {transform_indices = @transform_2, window_bounds = array<i64: 2, 8, 128>}]} {
    %c0 = arith.constant 0 : index
    %c0_0 = arith.constant 0 : index
    %c0_1 = arith.constant 0 : index
    %0 = vector.load %arg1[%c0, %c0_0, %c0_1] : memref<2x8x128xbf16, #tpu.memory_space<vmem>>, vector<2x8x128xbf16>
    %1 = vector.shape_cast %0 : vector<2x8x128xbf16> to vector<16x128xbf16>
    %c0_2 = arith.constant 0 : index
    %c0_3 = arith.constant 0 : index
    %2 = vector.load %arg2[%c0_2, %c0_3] : memref<128x384xbf16, #tpu.memory_space<vmem>>, vector<128x384xbf16>
    %cst = arith.constant dense<0.000000e+00> : vector<16x384xf32>
    %3 = tpu.matmul %1, %2, %cst {dimension_numbers = #tpu.dot_dimension_numbers<[1], [0], [0], [1], [0, 0, 1, 1], [], []>} : vector<16x128xbf16>, vector<128x384xbf16>, vector<16x384xf32> -> vector<16x384xf32>
    %4 = vector.extract_strided_slice %3 {offsets = [0, 0], sizes = [16, 128], strides = [1, 1]} : vector<16x384xf32> to vector<16x128xf32>
    %5 = vector.shape_cast %4 : vector<16x128xf32> to vector<2x8x128xf32>
    %6 = vector.extract_strided_slice %3 {offsets = [0, 128], sizes = [16, 128], strides = [1, 1]} : vector<16x384xf32> to vector<16x128xf32>
    %7 = vector.shape_cast %6 : vector<16x128xf32> to vector<2x8x128xf32>
    %8 = vector.extract_strided_slice %3 {offsets = [0, 256], sizes = [16, 128], strides = [1, 1]} : vector<16x384xf32> to vector<16x128xf32>
    %9 = vector.shape_cast %8 : vector<16x128xf32> to vector<2x8x128xf32>
    %10 = arith.truncf %7 : vector<2x8x128xf32> to vector<2x8x128xbf16>
    %11 = arith.truncf %5 : vector<2x8x128xf32> to vector<2x8x128xbf16>
    "tpu.trace_start"() <{level = 10 : i32, message = "btd,bsd->bts"}> : () -> ()
    %cst_4 = arith.constant dense<0.000000e+00> : vector<2x8x8xf32>
    %12 = tpu.matmul %10, %11, %cst_4 {dimension_numbers = #tpu.dot_dimension_numbers<[2], [2], [1], [1], [0, 0, 0, 1, 1, 1], [0], [0]>} : vector<2x8x128xbf16>, vector<2x8x128xbf16>, vector<2x8x8xf32> -> vector<2x8x8xf32>
    "tpu.trace_stop"() : () -> ()
    %cst_5 = arith.constant 0.0883883461 : f32
    %13 = vector.broadcast %cst_5 : f32 to vector<2x8x8xf32>
    %14 = arith.mulf %12, %13 : vector<2x8x8xf32>
    %15 = tpu.iota {dimensions = array<i32: 0>} : vector<8x8xi32>
    %16 = tpu.iota {dimensions = array<i32: 1>} : vector<8x8xi32>
    %17 = arith.cmpi sle, %16, %15 : vector<8x8xi32>
    %18 = vector.shape_cast %17 : vector<8x8xi1> to vector<1x8x8xi1>
    %cst_6 = arith.constant 0xFF800000 : f32
    %19 = vector.shape_cast %18 : vector<1x8x8xi1> to vector<1x8x8xi1>
    %20 = vector.broadcast %19 : vector<1x8x8xi1> to vector<2x8x8xi1>
    %21 = vector.broadcast %cst_6 : f32 to vector<2x8x8xf32>
    %22 = arith.select %20, %14, %21 : vector<2x8x8xi1>, vector<2x8x8xf32>
    %cst_7 = arith.constant dense<0xFF800000> : vector<2x8xf32>
    %23 = vector.multi_reduction <maximumf>, %22, %cst_7 [2] : vector<2x8x8xf32> to vector<2x8xf32>
    %24 = vector.shape_cast %23 : vector<2x8xf32> to vector<2x8x1xf32>
    %25 = vector.broadcast %24 : vector<2x8x1xf32> to vector<2x8x8xf32>
    %26 = arith.subf %22, %25 : vector<2x8x8xf32>
    %27 = math.exp %26 : vector<2x8x8xf32>
    %cst_8 = arith.constant dense<0.000000e+00> : vector<2x8xf32>
    %28 = vector.multi_reduction <add>, %27, %cst_8 [2] : vector<2x8x8xf32> to vector<2x8xf32>
    %29 = vector.shape_cast %28 : vector<2x8xf32> to vector<2x8x1xf32>
    %30 = tpu.reciprocal %29 {approx = true} : vector<2x8x1xf32> -> vector<2x8x1xf32>
    %31 = vector.broadcast %30 : vector<2x8x1xf32> to vector<2x8x8xf32>
    %32 = arith.mulf %27, %31 : vector<2x8x8xf32>
    %33 = arith.truncf %32 : vector<2x8x8xf32> to vector<2x8x8xbf16>
    %34 = arith.truncf %9 : vector<2x8x128xf32> to vector<2x8x128xbf16>
    "tpu.trace_start"() <{level = 10 : i32, message = "bts,bsd->btd"}> : () -> ()
    %cst_9 = arith.constant dense<0.000000e+00> : vector<2x8x128xf32>
    %35 = tpu.matmul %33, %34, %cst_9 {dimension_numbers = #tpu.dot_dimension_numbers<[2], [1], [1], [2], [0, 0, 0, 1, 1, 2], [0], [0]>} : vector<2x8x8xbf16>, vector<2x8x128xbf16>, vector<2x8x128xf32> -> vector<2x8x128xf32>
    "tpu.trace_stop"() : () -> ()
    %c0_10 = arith.constant 0 : index
    %c0_11 = arith.constant 0 : index
    %c0_12 = arith.constant 0 : index
    %36 = vector.load %arg3[%c0_10, %c0_11, %c0_12] : memref<2x8x128xf32, #tpu.memory_space<vmem>>, vector<2x8x128xf32>
    tpu.vector_store %arg3[%c0_10, %c0_11, %c0_12], %35 {strides = array<i32>} : memref<2x8x128xf32, #tpu.memory_space<vmem>>, vector<2x8x128xf32>,
    return
  }
  func.func @transform_0(%arg0: i32) -> (i32, i32, i32) {
    %c0_i32 = arith.constant 0 : i32
    %c0_i32_0 = arith.constant 0 : i32
    %c0_i32_1 = arith.constant 0 : i32
    return %arg0, %c0_i32, %c0_i32_0 : i32, i32, i32
  }
  func.func @transform_1(%arg0: i32) -> (i32, i32) {
    %c0_i32 = arith.constant 0 : i32
    %c0_i32_0 = arith.constant 0 : i32
    %c0_i32_1 = arith.constant 0 : i32
    return %c0_i32, %c0_i32_0 : i32, i32
  }
  func.func @transform_2(%arg0: i32) -> (i32, i32, i32) {
    %c0_i32 = arith.constant 0 : i32
    %c0_i32_0 = arith.constant 0 : i32
    %c0_i32_1 = arith.constant 0 : i32
    return %arg0, %c0_i32, %c0_i32_0 : i32, i32, i32
  }
}

</mosaic_0001>

<llo_original>
// kernel: tpu_custom_call.1
$region0: #{tpu_custom_call.1}
  #allocation0 [shape = 'u32[]', space=smem, size = 0x4, offset = 0x4, fixed_abs, tag = 'smem constant byte address 0x4 - core index']
  #allocation1 [shape = 'u32[144,128]{1,0:T(1,128)}', space=vmem, size = 0x12000, scoped, tag = 'internal scratch']
  %s0 = inlined_call_operand.hbm [shape: bf16[2,8,128], index: 0, kind: input, shape index: {}]
  %s1 = inlined_call_operand.hbm [shape: bf16[128,384], index: 1, kind: input, shape index: {}]
  %s2 = inlined_call_operand.hbm [shape: f32[2,8,128], index: 2, kind: output, shape index: {}]
  %s3 = sld [smem:[#allocation0]]
  $region26: #{tpu_custom_call.1} parent=0
    _
  %s5 = ssub.s32 1, %s3
  %s6 = scalar_select 0, %s5, %s3
  $region1: #{tpu_custom_call.1} parent=0
    #allocation2 [shape = 'u8[4096]{0}', space=vmem, size = 0x1000, scoped, tag = 'input window, operand 0, single buffered']
    #allocation3 [shape = 's32[1]{0}', space=sflag, size = 0x4, scoped, tag = 'scoped memory for tpu_custom_call.1']
    #allocation4 [shape = 's32[1]{0}', space=sflag, size = 0x4, scoped, tag = 'scoped memory for tpu_custom_call.1']
    #allocation5 [shape = 'u8[98304]{0}', space=vmem, size = 0x18000, scoped, tag = 'input window, operand 1, single buffered']
    #allocation6 [shape = 's32[1]{0}', space=sflag, size = 0x4, scoped, tag = 'scoped memory for tpu_custom_call.1']
    #allocation7 [shape = 'u8[8192]{0}', space=vmem, size = 0x2000, scoped, tag = 'output window, operand 0, single buffered']
    %7 = vsyncpa [#allocation3], 0
    %8 = vsyncpa [#allocation6], 0
    %9 = vsyncpa [#allocation4], 0
    // Predicated region
    $region2: #{tpu_custom_call.1} parent=1 // pred_check
      _
    $region3: #{tpu_custom_call.1} parent=1 // pred_check_branch
      %11 = sbr.rel (0) target = $region5
    $region4: #{tpu_custom_call.1} parent=1 // pred_region
      %s13 = ssub.s32 128, 128
      %14 = vsyncadd [#allocation3], %s13
      %s15 = sshll.u32 [#allocation2], 4
      %s16 = int_to_ptr.vmem [resolvable:$true] %s15
      %21 = dma.hbm_to_vmem [thread:$0]  %s0, 128, %s16, [#allocation3], 64, 64, 4
    $region5: #{tpu_custom_call.1} parent=1 // pred_fallthru
      _
    // Predicated region
    $region6: #{tpu_custom_call.1} parent=1 // pred_check
      _
    $region7: #{tpu_custom_call.1} parent=1 // pred_check_branch
      %23 = sbr.rel (0) target = $region9
    $region8: #{tpu_custom_call.1} parent=1 // pred_region
      %s25 = ssub.s32 3072, 3072
      %26 = vsyncadd [#allocation6], %s25
      %s27 = sshll.u32 [#allocation5], 4
      %s28 = int_to_ptr.vmem [resolvable:$true] %s27
      %33 = dma.hbm_to_vmem [thread:$0]  %s1, 3072, %s28, [#allocation6], 192, 192, 12
    $region9: #{tpu_custom_call.1} parent=1 // pred_fallthru
      _
    // Predicated region
    $region10: #{tpu_custom_call.1} parent=1 // pred_check
      _
    $region11: #{tpu_custom_call.1} parent=1 // pred_check_branch
      %35 = sbr.rel (0) target = $region13
    $region12: #{tpu_custom_call.1} parent=1 // pred_region
      %36 = dma.done [#allocation3], 128
    $region13: #{tpu_custom_call.1} parent=1 // pred_fallthru
      _
    // Predicated region
    $region14: #{tpu_custom_call.1} parent=1 // pred_check
      _
    $region15: #{tpu_custom_call.1} parent=1 // pred_check_branch
      %38 = sbr.rel (0) target = $region17
    $region16: #{tpu_custom_call.1} parent=1 // pred_region
      %39 = dma.done [#allocation6], 3072
    $region17: #{tpu_custom_call.1} parent=1 // pred_fallthru
      _
    %v41 = vld [vmem:[#allocation2] sm:$0xf]
    %v42 = vld [vmem:[#allocation2 + $0x4] sm:$0xf]
    %v43 = vld [vmem:[#allocation5] sm:$0xff]
    %v44 = vld [vmem:[#allocation5 + $0x8] sm:$0xf]
    %v45 = vld [vmem:[#allocation5 + $0xc] sm:$0xff]
    %v46 = vld [vmem:[#allocation5 + $0x14] sm:$0xf]
    %v47 = vld [vmem:[#allocation5 + $0x18] sm:$0xff]
    %v48 = vld [vmem:[#allocation5 + $0x20] sm:$0xf]
    %v49 = vld [vmem:[#allocation5 + $0x24] sm:$0xff]
    %v50 = vld [vmem:[#allocation5 + $0x2c] sm:$0xf]
    %v51 = vld [vmem:[#allocation5 + $0x30] sm:$0xff]
    %v52 = vld [vmem:[#allocation5 + $0x38] sm:$0xf]
    %v53 = vld [vmem:[#allocation5 + $0x3c] sm:$0xff]
    %v54 = vld [vmem:[#allocation5 + $0x44] sm:$0xf]
    %v55 = vld [vmem:[#allocation5 + $0x48] sm:$0xff]
    %v56 = vld [vmem:[#allocation5 + $0x50] sm:$0xf]
    %v57 = vld [vmem:[#allocation5 + $0x54] sm:$0xff]
    %v58 = vld [vmem:[#allocation5 + $0x5c] sm:$0xf]
    %v59 = vld [vmem:[#allocation5 + $0x60] sm:$0xff]
    %v60 = vld [vmem:[#allocation5 + $0x68] sm:$0xf]
    %v61 = vld [vmem:[#allocation5 + $0x6c] sm:$0xff]
    %v62 = vld [vmem:[#allocation5 + $0x74] sm:$0xf]
    %v63 = vld [vmem:[#allocation5 + $0x78] sm:$0xff]
    %v64 = vld [vmem:[#allocation5 + $0x80] sm:$0xf]
    %v65 = vld [vmem:[#allocation5 + $0x84] sm:$0xff]
    %v66 = vld [vmem:[#allocation5 + $0x8c] sm:$0xf]
    %v67 = vld [vmem:[#allocation5 + $0x90] sm:$0xff]
    %v68 = vld [vmem:[#allocation5 + $0x98] sm:$0xf]
    %v69 = vld [vmem:[#allocation5 + $0x9c] sm:$0xff]
    %v70 = vld [vmem:[#allocation5 + $0xa4] sm:$0xf]
    %v71 = vld [vmem:[#allocation5 + $0xa8] sm:$0xff]
    %v72 = vld [vmem:[#allocation5 + $0xb0] sm:$0xf]
    %v73 = vld [vmem:[#allocation5 + $0xb4] sm:$0xff]
    %v74 = vld [vmem:[#allocation5 + $0xbc] sm:$0xf]
    %v77 = vunpack.c.l.b16 %v41
    %v78 = vunpack.c.l.b16 %v42
    %v79 = vpack.c.b16 %v78, %v77
    %v113 = vunpack.c.l.b16 %v43
    %v114 = vunpack.c.h.b16 %v43
    %v115 = vunpack.c.l.b16 %v44
    %v116 = vunpack.c.l.b16 %v45
    %v117 = vunpack.c.h.b16 %v45
    %v118 = vunpack.c.l.b16 %v46
    %v119 = vunpack.c.l.b16 %v47
    %v120 = vunpack.c.h.b16 %v47
    %v121 = vunpack.c.l.b16 %v48
    %v122 = vunpack.c.l.b16 %v49
    %v123 = vunpack.c.h.b16 %v49
    %v124 = vunpack.c.l.b16 %v50
    %v125 = vunpack.c.l.b16 %v51
    %v126 = vunpack.c.h.b16 %v51
    %v127 = vunpack.c.l.b16 %v52
    %v128 = vunpack.c.l.b16 %v53
    %v129 = vunpack.c.h.b16 %v53
    %v130 = vunpack.c.l.b16 %v54
    %v131 = vunpack.c.l.b16 %v55
    %v132 = vunpack.c.h.b16 %v55
    %v133 = vunpack.c.l.b16 %v56
    %v134 = vunpack.c.l.b16 %v57
    %v135 = vunpack.c.h.b16 %v57
    %v136 = vunpack.c.l.b16 %v58
    %v137 = vunpack.c.l.b16 %v59
    %v138 = vunpack.c.h.b16 %v59
    %v139 = vunpack.c.l.b16 %v60
    %v140 = vunpack.c.l.b16 %v61
    %v141 = vunpack.c.h.b16 %v61
    %v142 = vunpack.c.l.b16 %v62
    %v143 = vunpack.c.l.b16 %v63
    %v144 = vunpack.c.h.b16 %v63
    %v145 = vunpack.c.l.b16 %v64
    %v146 = vunpack.c.l.b16 %v65
    %v147 = vunpack.c.h.b16 %v65
    %v148 = vunpack.c.l.b16 %v66
    %v149 = vunpack.c.l.b16 %v67
    %v150 = vunpack.c.h.b16 %v67
    %v151 = vunpack.c.l.b16 %v68
    %v152 = vunpack.c.l.b16 %v69
    %v153 = vunpack.c.h.b16 %v69
    %v154 = vunpack.c.l.b16 %v70
    %v155 = vunpack.c.l.b16 %v71
    %v156 = vunpack.c.h.b16 %v71
    %v157 = vunpack.c.l.b16 %v72
    %v158 = vunpack.c.l.b16 %v73
    %v159 = vunpack.c.h.b16 %v73
    %v160 = vunpack.c.l.b16 %v74
    %v161 = vpack.c.b16 %v116, %v113
    %v162 = vpack.c.b16 %v117, %v114
    %v163 = vpack.c.b16 %v118, %v115
    %v164 = vpack.c.b16 %v122, %v119
    %v165 = vpack.c.b16 %v123, %v120
    %v166 = vpack.c.b16 %v124, %v121
    %v167 = vpack.c.b16 %v128, %v125
    %v168 = vpack.c.b16 %v129, %v126
    %v169 = vpack.c.b16 %v130, %v127
    %v170 = vpack.c.b16 %v134, %v131
    %v171 = vpack.c.b16 %v135, %v132
    %v172 = vpack.c.b16 %v136, %v133
    %v173 = vpack.c.b16 %v140, %v137
    %v174 = vpack.c.b16 %v141, %v138
    %v175 = vpack.c.b16 %v142, %v139
    %v176 = vpack.c.b16 %v146, %v143
    %v177 = vpack.c.b16 %v147, %v144
    %v178 = vpack.c.b16 %v148, %v145
    %v179 = vpack.c.b16 %v152, %v149
    %v180 = vpack.c.b16 %v153, %v150
    %v181 = vpack.c.b16 %v154, %v151
    %v182 = vpack.c.b16 %v158, %v155
    %v183 = vpack.c.b16 %v159, %v156
    %v184 = vpack.c.b16 %v160, %v157
    %209 = vmatprep.subr.bf16.mxu0 %v162
    %210 = vmatpush1.bf16.msra.mxu0 %v161
    %211 = vmatprep.subr.bf16.mxu0 %v165
    %212 = vmatpush1.bf16.msra.mxu0 %v164
    %213 = vmatprep.subr.bf16.mxu0 %v168
    %214 = vmatpush1.bf16.msra.mxu0 %v167
    %215 = vmatprep.subr.bf16.mxu0 %v171
    %216 = vmatpush1.bf16.msra.mxu0 %v170
    %217 = vmatprep.subr.bf16.mxu0 %v174
    %218 = vmatpush1.bf16.msra.mxu0 %v173
    %219 = vmatprep.subr.bf16.mxu0 %v177
    %220 = vmatpush1.bf16.msra.mxu0 %v176
    %221 = vmatprep.subr.bf16.mxu0 %v180
    %222 = vmatpush1.bf16.msra.mxu0 %v179
    %223 = vmatprep.subr.bf16.mxu0 %v183
    %224 = vmatpush1.bf16.msra.mxu0 %v182
    %225 = vmatprep.subr.bf16.mxu0 0
    %226 = vmatpush1.bf16.msra.mxu0 0
    %227 = vmatprep.subr.bf16.mxu0 0
    %228 = vmatpush1.bf16.msra.mxu0 0
    %229 = vmatprep.subr.bf16.mxu0 0
    %230 = vmatpush1.bf16.msra.mxu0 0
    %231 = vmatprep.subr.bf16.mxu0 0
    %232 = vmatpush1.bf16.msra.mxu0 0
    %233 = vmatprep.subr.bf16.mxu0 0
    %234 = vmatpush1.bf16.msra.mxu0 0
    %235 = vmatprep.subr.bf16.mxu0 0
    %236 = vmatpush1.bf16.msra.mxu0 0
    %237 = vmatprep.subr.bf16.mxu0 0
    %238 = vmatpush1.bf16.msra.mxu0 0
    %239 = vmatprep.subr.bf16.mxu0 0
    %240 = vmatpush1.bf16.msra.mxu0 0
    %241 = vmatprep.mubr.bf16.mxu0 0
    %242 = vmatmul.mubr.bf16.gmra.mrb[0].mxu0 %v79
    %v243 = vpop.f32.mrb[0].mxu0
    %v244 = vadd.f32 0.0, %v243
    %v245 = vpop.f32.mrb[0].mxu0
    %v246 = vadd.f32 0.0, %v245
    %v247 = vpop.f32.mrb[0].mxu0
    %v248 = vadd.f32 0.0, %v247
    %v249 = vpop.f32.mrb[0].mxu0
    %v250 = vadd.f32 0.0, %v249
    %251 = vdwg.mxu0
    %252 = vmatprep.subr.bf16.mxu0 0
    %253 = vmatpush1.bf16.msra.mxu0 %v163
    %254 = vmatprep.subr.bf16.mxu0 0
    %255 = vmatpush1.bf16.msra.mxu0 %v166
    %256 = vmatprep.subr.bf16.mxu0 0
    %257 = vmatpush1.bf16.msra.mxu0 %v169
    %258 = vmatprep.subr.bf16.mxu0 0
    %259 = vmatpush1.bf16.msra.mxu0 %v172
    %260 = vmatprep.subr.bf16.mxu0 0
    %261 = vmatpush1.bf16.msra.mxu0 %v175
    %262 = vmatprep.subr.bf16.mxu0 0
    %263 = vmatpush1.bf16.msra.mxu0 %v178
    %264 = vmatprep.subr.bf16.mxu0 0
    %265 = vmatpush1.bf16.msra.mxu0 %v181
    %266 = vmatprep.subr.bf16.mxu0 0
    %267 = vmatpush1.bf16.msra.mxu0 %v184
    %268 = vmatprep.subr.bf16.mxu0 0
    %269 = vmatpush1.bf16.msra.mxu0 0
    %270 = vmatprep.subr.bf16.mxu0 0
    %271 = vmatpush1.bf16.msra.mxu0 0
    %272 = vmatprep.subr.bf16.mxu0 0
    %273 = vmatpush1.bf16.msra.mxu0 0
    %274 = vmatprep.subr.bf16.mxu0 0
    %275 = vmatpush1.bf16.msra.mxu0 0
    %276 = vmatprep.subr.bf16.mxu0 0
    %277 = vmatpush1.bf16.msra.mxu0 0
    %278 = vmatprep.subr.bf16.mxu0 0
    %279 = vmatpush1.bf16.msra.mxu0 0
    %280 = vmatprep.subr.bf16.mxu0 0
    %281 = vmatpush1.bf16.msra.mxu0 0
    %282 = vmatprep.subr.bf16.mxu0 0
    %283 = vmatpush1.bf16.msra.mxu0 0
    %284 = vmatprep.mubr.bf16.mxu0 0
    %285 = vmatmul.mubr.bf16.gmra.mrb[0].mxu0 %v79
    %v286 = vpop.f32.mrb[0].mxu0
    %v287 = vadd.f32 0.0, %v286
    %v288 = vpop.f32.mrb[0].mxu0
    %v289 = vpop.f32.mrb[0].mxu0
    %v290 = vadd.f32 0.0, %v289
    %v291 = vpop.f32.mrb[0].mxu0
    %292 = vdwg.mxu0
    %v293 = vpack.c.bf16 %v246, %v246
    %v294 = vpack.c.bf16 %v250, %v250
    %v295 = vpack.c.bf16 %v244, %v244
    %v296 = vpack.c.bf16 %v248, %v248
    %297 = vmatprep.subr.bf16.mxu0 0
    %298 = vmatpush1.bf16.xpose.msra.mxu0 %v295
    %299 = vmatprep.subr.bf16.mxu0 0
    %300 = vmatpush1.bf16.xpose.msra.mxu0 0
    %301 = vmatprep.subr.bf16.mxu0 0
    %302 = vmatpush1.bf16.xpose.msra.mxu0 0
    %303 = vmatprep.subr.bf16.mxu0 0
    %304 = vmatpush1.bf16.xpose.msra.mxu0 0
    %305 = vmatprep.subr.bf16.mxu0 0
    %306 = vmatpush1.bf16.xpose.msra.mxu0 0
    %307 = vmatprep.subr.bf16.mxu0 0
    %308 = vmatpush1.bf16.xpose.msra.mxu0 0
    %309 = vmatprep.subr.bf16.mxu0 0
    %310 = vmatpush1.bf16.xpose.msra.mxu0 0
    %311 = vmatprep.subr.bf16.mxu0 0
    %312 = vmatpush1.bf16.xpose.msra.mxu0 0
    %313 = vmatprep.subr.bf16.mxu0 0
    %314 = vmatpush1.bf16.xpose.msra.mxu0 0
    %315 = vmatprep.subr.bf16.mxu0 0
    %316 = vmatpush1.bf16.xpose.msra.mxu0 0
    %317 = vmatprep.subr.bf16.mxu0 0
    %318 = vmatpush1.bf16.xpose.msra.mxu0 0
    %319 = vmatprep.subr.bf16.mxu0 0
    %320 = vmatpush1.bf16.xpose.msra.mxu0 0
    %321 = vmatprep.subr.bf16.mxu0 0
    %322 = vmatpush1.bf16.xpose.msra.mxu0 0
    %323 = vmatprep.subr.bf16.mxu0 0
    %324 = vmatpush1.bf16.xpose.msra.mxu0 0
    %325 = vmatprep.subr.bf16.mxu0 0
    %326 = vmatpush1.bf16.xpose.msra.mxu0 0
    %327 = vmatprep.subr.bf16.mxu0 0
    %328 = vmatpush1.bf16.xpose.msra.mxu0 0
    %329 = vmatprep.mubr.bf16.mxu0 0
    %330 = vmatmul.mubr.bf16.gmra.mrb[0].mxu0 %v293
    %v331 = vpop.f32.mrb[0].mxu0
    %v332 = vadd.f32 0.0, %v331
    %v333 = vpop.f32.mrb[0].mxu0
    %v334 = vpop.f32.mrb[0].mxu0
    %v335 = vpop.f32.mrb[0].mxu0
    %336 = vdwg.mxu0
    %337 = vmatprep.subr.bf16.mxu0 0
    %338 = vmatpush1.bf16.xpose.msra.mxu0 %v296
    %339 = vmatprep.subr.bf16.mxu0 0
    %340 = vmatpush1.bf16.xpose.msra.mxu0 0
    %341 = vmatprep.subr.bf16.mxu0 0
    %342 = vmatpush1.bf16.xpose.msra.mxu0 0
    %343 = vmatprep.subr.bf16.mxu0 0
    %344 = vmatpush1.bf16.xpose.msra.mxu0 0
    %345 = vmatprep.subr.bf16.mxu0 0
    %346 = vmatpush1.bf16.xpose.msra.mxu0 0
    %347 = vmatprep.subr.bf16.mxu0 0
    %348 = vmatpush1.bf16.xpose.msra.mxu0 0
    %349 = vmatprep.subr.bf16.mxu0 0
    %350 = vmatpush1.bf16.xpose.msra.mxu0 0
    %351 = vmatprep.subr.bf16.mxu0 0
    %352 = vmatpush1.bf16.xpose.msra.mxu0 0
    %353 = vmatprep.subr.bf16.mxu0 0
    %354 = vmatpush1.bf16.xpose.msra.mxu0 0
    %355 = vmatprep.subr.bf16.mxu0 0
    %356 = vmatpush1.bf16.xpose.msra.mxu0 0
    %357 = vmatprep.subr.bf16.mxu0 0
    %358 = vmatpush1.bf16.xpose.msra.mxu0 0
    %359 = vmatprep.subr.bf16.mxu0 0
    %360 = vmatpush1.bf16.xpose.msra.mxu0 0
    %361 = vmatprep.subr.bf16.mxu0 0
    %362 = vmatpush1.bf16.xpose.msra.mxu0 0
    %363 = vmatprep.subr.bf16.mxu0 0
    %364 = vmatpush1.bf16.xpose.msra.mxu0 0
    %365 = vmatprep.subr.bf16.mxu0 0
    %366 = vmatpush1.bf16.xpose.msra.mxu0 0
    %367 = vmatprep.subr.bf16.mxu0 0
    %368 = vmatpush1.bf16.xpose.msra.mxu0 0
    %369 = vmatprep.mubr.bf16.mxu0 0
    %370 = vmatmul.mubr.bf16.gmra.mrb[0].mxu0 %v294
    %v371 = vpop.f32.mrb[0].mxu0
    %v372 = vadd.f32 0.0, %v371
    %v373 = vpop.f32.mrb[0].mxu0
    %v374 = vpop.f32.mrb[0].mxu0
    %v375 = vpop.f32.mrb[0].mxu0
    %376 = vdwg.mxu0
    %v377 = vmul.f32 %v332, 0.088388346
    %v378 = vmul.f32 %v372, 0.088388346
    %v379 = vlaneseq
    %v380 = vshrl.u32 %v379, 7
    %v381 = vlaneseq
    %v382 = vand.u32 %v381, 127
    %vm383 = vcmp.le.s32.totalorder %v382, %v380
    %v384 = vsel %vm383, 1, 0
    %vm385 = vcmp.eq.s32.totalorder %v384, 1
    %v386 = vsel %vm385, %v377, -inf
    %v387 = vsel %vm385, %v378, -inf
    %vm388 = vcmask 64512
    %v389 = vsel %vm388, %v386, -inf
    %390 = vmax.xlane.f32.xlu0 %v389
    %v391 = vpop.xlane.xlu0 %390
    %v392 = vsel %vm388, %v387, -inf
    %393 = vmax.xlane.f32.xlu0 %v392
    %v394 = vpop.xlane.xlu0 %393
    %v395 = vsub.f32 %v386, %v391
    %v396 = vsub.f32 %v387, %v394
    %v397 = vmul.f32 %v395, 1.442695
    %v398 = vpow.pop %v397
    %v399 = vmul.f32 %v396, 1.442695
    %v400 = vpow.pop %v399
    %v401 = vsel %vm388, %v398, 0.0
    %402 = vadd.xlane.f32.xlu0 %v401
    %v403 = vpop.xlane.xlu0 %402
    %v404 = vsel %vm388, %v400, 0.0
    %405 = vadd.xlane.f32.xlu0 %v404
    %v406 = vpop.xlane.xlu0 %405
    %v407 = vrcp.pop %v403
    %v408 = vrcp.pop %v406
    %v409 = vmul.f32 %v398, %v407
    %v410 = vmul.f32 %v400, %v408
    %v411 = vpack.c.bf16 %v409, %v409
    %v412 = vpack.c.bf16 %v410, %v410
    %v413 = vpack.c.bf16 %v287, %v287
    %v414 = vpack.c.bf16 %v290, %v290
    %v416 = vsel %vm388, %v411, 0
    %vm418 = vcmask 1043456
    %v420 = vsel %vm418, %v413, 0
    %422 = vmatprep.subr.bf16.mxu0 0
    %423 = vmatpush1.bf16.msra.mxu0 %v420
    %424 = vmatprep.subr.bf16.mxu0 0
    %425 = vmatpush1.bf16.msra.mxu0 0
    %426 = vmatprep.subr.bf16.mxu0 0
    %427 = vmatpush1.bf16.msra.mxu0 0
    %428 = vmatprep.subr.bf16.mxu0 0
    %429 = vmatpush1.bf16.msra.mxu0 0
    %430 = vmatprep.subr.bf16.mxu0 0
    %431 = vmatpush1.bf16.msra.mxu0 0
    %432 = vmatprep.subr.bf16.mxu0 0
    %433 = vmatpush1.bf16.msra.mxu0 0
    %434 = vmatprep.subr.bf16.mxu0 0
    %435 = vmatpush1.bf16.msra.mxu0 0
    %436 = vmatprep.subr.bf16.mxu0 0
    %437 = vmatpush1.bf16.msra.mxu0 0
    %438 = vmatprep.subr.bf16.mxu0 0
    %439 = vmatpush1.bf16.msra.mxu0 0
    %440 = vmatprep.subr.bf16.mxu0 0
    %441 = vmatpush1.bf16.msra.mxu0 0
    %442 = vmatprep.subr.bf16.mxu0 0
    %443 = vmatpush1.bf16.msra.mxu0 0
    %444 = vmatprep.subr.bf16.mxu0 0
    %445 = vmatpush1.bf16.msra.mxu0 0
    %446 = vmatprep.subr.bf16.mxu0 0
    %447 = vmatpush1.bf16.msra.mxu0 0
    %448 = vmatprep.subr.bf16.mxu0 0
    %449 = vmatpush1.bf16.msra.mxu0 0
    %450 = vmatprep.subr.bf16.mxu0 0
    %451 = vmatpush1.bf16.msra.mxu0 0
    %452 = vmatprep.subr.bf16.mxu0 0
    %453 = vmatpush1.bf16.msra.mxu0 0
    %454 = vmatprep.mubr.bf16.mxu0 0
    %455 = vmatmul.mubr.bf16.gmra.mrb[0].mxu0 %v416
    %v456 = vpop.f32.mrb[0].mxu0
    %v457 = vadd.f32 0.0, %v456
    %v458 = vpop.f32.mrb[0].mxu0
    %v459 = vpop.f32.mrb[0].mxu0
    %v460 = vpop.f32.mrb[0].mxu0
    %461 = vdwg.mxu0
    %v463 = vsel %vm388, %v412, 0
    %v466 = vsel %vm418, %v414, 0
    %468 = vmatprep.subr.bf16.mxu0 0
    %469 = vmatpush1.bf16.msra.mxu0 %v466
    %470 = vmatprep.subr.bf16.mxu0 0
    %471 = vmatpush1.bf16.msra.mxu0 0
    %472 = vmatprep.subr.bf16.mxu0 0
    %473 = vmatpush1.bf16.msra.mxu0 0
    %474 = vmatprep.subr.bf16.mxu0 0
    %475 = vmatpush1.bf16.msra.mxu0 0
    %476 = vmatprep.subr.bf16.mxu0 0
    %477 = vmatpush1.bf16.msra.mxu0 0
    %478 = vmatprep.subr.bf16.mxu0 0
    %479 = vmatpush1.bf16.msra.mxu0 0
    %480 = vmatprep.subr.bf16.mxu0 0
    %481 = vmatpush1.bf16.msra.mxu0 0
    %482 = vmatprep.subr.bf16.mxu0 0
    %483 = vmatpush1.bf16.msra.mxu0 0
    %484 = vmatprep.subr.bf16.mxu0 0
    %485 = vmatpush1.bf16.msra.mxu0 0
    %486 = vmatprep.subr.bf16.mxu0 0
    %487 = vmatpush1.bf16.msra.mxu0 0
    %488 = vmatprep.subr.bf16.mxu0 0
    %489 = vmatpush1.bf16.msra.mxu0 0
    %490 = vmatprep.subr.bf16.mxu0 0
    %491 = vmatpush1.bf16.msra.mxu0 0
    %492 = vmatprep.subr.bf16.mxu0 0
    %493 = vmatpush1.bf16.msra.mxu0 0
    %494 = vmatprep.subr.bf16.mxu0 0
    %495 = vmatpush1.bf16.msra.mxu0 0
    %496 = vmatprep.subr.bf16.mxu0 0
    %497 = vmatpush1.bf16.msra.mxu0 0
    %498 = vmatprep.subr.bf16.mxu0 0
    %499 = vmatpush1.bf16.msra.mxu0 0
    %500 = vmatprep.mubr.bf16.mxu0 0
    %501 = vmatmul.mubr.bf16.gmra.mrb[0].mxu0 %v463
    %v502 = vpop.f32.mrb[0].mxu0
    %v503 = vadd.f32 0.0, %v502
    %v504 = vpop.f32.mrb[0].mxu0
    %v505 = vpop.f32.mrb[0].mxu0
    %v506 = vpop.f32.mrb[0].mxu0
    %507 = vdwg.mxu0
    %508 = vst [vmem:[#allocation7] sm:$0xff] %v457
    %509 = vst [vmem:[#allocation7 + $0x8] sm:$0xff] %v503
    // Predicated region
    $region18: #{tpu_custom_call.1} parent=1 // pred_check
      _
    $region19: #{tpu_custom_call.1} parent=1 // pred_check_branch
      %511 = sbr.rel (0) target = $region21
    $region20: #{tpu_custom_call.1} parent=1 // pred_region
      %s513 = ssub.s32 256, 256
      %514 = vsyncadd [#allocation4], %s513
      %s515 = sshll.u32 [#allocation7], 4
      %s516 = int_to_ptr.vmem [resolvable:$true] %s515
      %521 = dma.vmem_to_hbm [thread:$0]  %s516, 256, %s2, [#allocation4], 128, 128, 8
    $region21: #{tpu_custom_call.1} parent=1 // pred_fallthru
      _
    // Predicated region
    $region22: #{tpu_custom_call.1} parent=1 // pred_check
      _
    $region23: #{tpu_custom_call.1} parent=1 // pred_check_branch
      %523 = sbr.rel (0) target = $region25
    $region24: #{tpu_custom_call.1} parent=1 // pred_region
      %524 = dma.done [#allocation4], 256
    $region25: #{tpu_custom_call.1} parent=1 // pred_fallthru
      _
    %525 = vsyncpa [#allocation3], 1
    %526 = vsyncpa [#allocation6], 1
    %527 = vsyncpa [#allocation4], 1

</llo_original>
